<compile_context>
chip_gen: v7x
topology: tpu7x:2x2x1
jax: 0.10.0
libtpu: 0.0.40
codegen_flags: <defaults>
</compile_context>

<pallas_src>
import functools
from math import gcd

import jax
import jax.numpy as jnp
from jax import lax
from jax.experimental import pallas as pl
from jax.experimental.pallas import tpu as pltpu

H0 = 2    # conv1 output channels
H1 = 20   # conv2 output channels


def _critic_kernel(xt_ref, aux_ref, wpack_ref, w3p_ref, w3aux_ref, g_ref, out_ref,
                   *, C1, KX, R2, WB):
    """One batch block per grid step.

    xt_ref   : (1, KX, BB*A)   input block, rows=(t',f), cols=(b,a), compute dtype
    aux_ref  : (1, 3, BB*A)    rows = [w0, action[:, :-1], ones] along lanes (f32)
    wpack_ref: (R2+H1, WB+1)   rows [0,C1): [banded conv1 weight | b1]
                               rows [R2,R2+H1): [conv2 weight | b2]
    w3p_ref  : (H1, BB*A)      final-linear weights for phi1, tiled over BB
    w3aux_ref: (3, BB*A)       final-linear weights for (w0, action) + bias/A row
    g_ref    : (BB*A, BB)      0/1 batch-grouping matrix (sums assets per batch)
    out_ref  : (1, 1, BB)      lane row of critic values
    """
    xt = xt_ref[0]                                              # (KX, BB*A)

    # unpack the parameter slab (static slices of a tiny VMEM buffer)
    w1t = wpack_ref[0:C1, 0:KX]                                 # (C1, KX)
    b1 = wpack_ref[0:C1, WB:WB + 1]                             # (C1, 1)
    w2t = wpack_ref[R2:R2 + H1, 0:C1]                           # (H1, C1)
    b2 = wpack_ref[R2:R2 + H1, WB:WB + 1]                       # (H1, 1)

    # conv1: every tap, time step, asset and batch element in ONE matmul
    phi0 = jnp.dot(w1t, xt, preferred_element_type=jnp.float32)
    phi0 = jnp.maximum(phi0 + b1.astype(jnp.float32), 0.0)      # (C1, BB*A) f32

    # conv2: contracts (time, H0) in ONE matmul (MXU fed in compute dtype)
    phi1 = jnp.dot(w2t, phi0.astype(xt.dtype), preferred_element_type=jnp.float32)
    phi1 = jnp.maximum(phi1 + b2.astype(jnp.float32), 0.0)      # (H1, BB*A) f32

    # fused final Linear((H1+2)*A -> 1): channel reduction + (w0, action, bias)
    # terms, then the per-batch asset sum via the small 0/1 grouping matmul.
    cs = jnp.sum(phi1 * w3p_ref[...].astype(jnp.float32), axis=0, keepdims=True)
    cs = cs + jnp.sum(aux_ref[0] * w3aux_ref[...], axis=0, keepdims=True)
    out_ref[0] = jnp.dot(cs.astype(g_ref.dtype), g_ref[...],
                         preferred_element_type=jnp.float32)

    # TODO(synk): BatchNorm1d branch (batch_norm=True) not implemented; only the
    # default batch_norm=False forward path is reproduced here.


def _choose_block(B, A):
    """Pick (block_b, padded_B): lanes = block_b*A is a multiple of 128, block_b
    capped so the batch-grouping matrix stays small (<= ~2 MiB) on all chips."""
    q = 128 // gcd(A, 128)                       # min block_b with block_b*A % 128 == 0
    cap = max(q, min(256, (2048 // max(A, 1)) // q * q))
    bp = -(-B // q) * q                          # pad batch up to a multiple of q
    if bp <= cap:
        block_b = bp
    else:
        block_b = cap
        bp = -(-B // cap) * cap
    # prefer >= 2 grid steps (v7x megacore) when each half stays lane-dense
    if bp // block_b == 1 and block_b % (2 * q) == 0:
        block_b //= 2
    return block_b, bp


def critic_forward_pallas(x, action, params, *, block_b=None,
                          compute_dtype=jnp.float32):
    x = x.astype(jnp.float32)
    action = action.astype(jnp.float32)
    B, F_, T, A = x.shape
    assert T >= 4, "need at least 4 time steps"
    assert action.shape[1] == A + 1, "action_dim must equal n_assets + 1"
    t_out = T - 3                          # conv2 kernel == stride == T - 3
    KX = (T - 1) * F_                      # conv1 contraction size (time', feature)
    C1 = t_out * H0                        # conv1 output rows (time, channel)

    if block_b is None:
        block_b, Bp = _choose_block(B, A)
    else:
        Bp = -(-B // block_b) * block_b
    nb = Bp // block_b
    bba = block_b * A

    # ---- pad batch so every block is full and the lane dim is dense ----
    if Bp != B:
        x = jnp.pad(x, ((0, Bp - B), (0, 0), (0, 0), (0, 0)))
        action = jnp.pad(action, ((0, Bp - B), (0, 0)))

    # ---- input re-layout: ONE fused transpose, columns = (batch, asset) ----
    xs = x[:, :, 1:, :].reshape(nb, block_b, F_, T - 1, A)
    xt = jnp.transpose(xs, (0, 3, 2, 1, 4)).reshape(nb, KX, bba).astype(compute_dtype)

    # ---- w0 / action / bias carrier rows (kept f32; they hit the output directly) ----
    w0 = x[:, 0, 0, :].reshape(nb, block_b, A)            # w0 = x[:, :1, :1, :]
    ac = action[:, :-1].reshape(nb, block_b, A)           # action[:, ..., :-1]
    ones = jnp.ones((nb, block_b, A), jnp.float32)
    aux = jnp.transpose(jnp.stack([w0, ac, ones], axis=2),
                        (0, 2, 1, 3)).reshape(nb, 3, bba)

    # ---- weight re-layout (tiny, trace time) ----
    # conv1 as banded/Toeplitz matrix: w1big[t'*F+f, t*H0+c] = conv1_w[c, f, t'-t]
    w1 = params["conv1_w"][:, :, :, 0]                    # (H0, F, 3)
    w1big = jnp.zeros((KX, C1), jnp.float32)
    for t in range(t_out):
        for k in range(3):
            w1big = w1big.at[(t + k) * F_:(t + k + 1) * F_,
                             t * H0:(t + 1) * H0].set(w1[:, :, k].T)
    b1 = jnp.tile(params["conv1_b"], t_out)               # (C1,) row index = t*H0+c
    w2t = jnp.transpose(params["conv2_w"][:, :, :, 0], (0, 2, 1)).reshape(H1, C1)

    # pack all conv weights/biases into ONE slab (fewer step-0 DMAs); bias = last col
    R2 = -(-C1 // 16) * 16                                # aligned row offset of conv2 block
    WB = max(KX, C1)                                      # bias column index
    wpack = jnp.zeros((R2 + H1, WB + 1), jnp.float32)
    wpack = wpack.at[:C1, :KX].set(w1big.T)
    wpack = wpack.at[:C1, WB].set(b1)
    wpack = wpack.at[R2:R2 + H1, :C1].set(w2t)
    wpack = wpack.at[R2:R2 + H1, WB].set(params["conv2_b"])
    wpack = wpack.astype(compute_dtype)

    # final-linear weights, tiled over the batch block; bias folded in as b3/A per lane
    w3 = params["lin_w"].reshape(-1).astype(jnp.float32)  # [(H1+2)*A]
    w3p = jnp.tile(w3[:H1 * A].reshape(H1, A), (1, block_b)).astype(compute_dtype)
    w3aux = jnp.concatenate(
        [jnp.tile(w3[H1 * A:(H1 + 1) * A].reshape(1, A), (1, block_b)),
         jnp.tile(w3[(H1 + 1) * A:(H1 + 2) * A].reshape(1, A), (1, block_b)),
         jnp.full((1, bba), params["lin_b"][0] / A, jnp.float32)], axis=0)
    # 0/1 matrix that sums the A assets of each batch element (constant index_map
    # -> fetched once per call; block_b is capped so it stays <= ~2 MiB)
    gmat = jnp.repeat(jnp.eye(block_b, dtype=jnp.float32), A, axis=0).astype(compute_dtype)

    kernel = functools.partial(_critic_kernel, C1=C1, KX=KX, R2=R2, WB=WB)
    # Note: total VMEM footprint at the largest block is < ~5 MiB, well under the
    # default scoped limit on v5e/v6e/v7x, so no vmem_limit raise / single-buffering
    # (pl.Buffered(1)) of the constant operands is required here.
    out = pl.pallas_call(
        kernel,
        out_shape=jax.ShapeDtypeStruct((nb, 1, block_b), jnp.float32),
        grid=(nb,),
        in_specs=[
            pl.BlockSpec((1, KX, bba), lambda i: (i, 0, 0)),    # xt (streamed)
            pl.BlockSpec((1, 3, bba), lambda i: (i, 0, 0)),     # aux (streamed)
            pl.BlockSpec((R2 + H1, WB + 1), lambda i: (0, 0)),  # packed conv params
            pl.BlockSpec((H1, bba), lambda i: (0, 0)),          # w3 (phi1 part)
            pl.BlockSpec((3, bba), lambda i: (0, 0)),           # w3 (w0/act/bias part)
            pl.BlockSpec((bba, block_b), lambda i: (0, 0)),     # batch-grouping matrix
        ],
        out_specs=pl.BlockSpec((1, 1, block_b), lambda i: (i, 0, 0)),
        compiler_params=pltpu.CompilerParams(dimension_semantics=("parallel",)),
    )(xt, aux, wpack, w3p, w3aux, gmat)

    return out.reshape(Bp, 1)[:B]


def reference_forward(x, action, params):
    """Pure-JAX (XLA conv) reference mirroring the PyTorch forward."""
    x = x.astype(jnp.float32)
    action = action.astype(jnp.float32)
    B, _, T, _ = x.shape
    t_out = T - 3
    act = action[:, None, None, :-1]
    w0 = x[:, :1, :1, :]
    xb = x[:, :, 1:, :]
    phi0 = jax.nn.relu(
        lax.conv_general_dilated(xb, params["conv1_w"], (1, 1), "VALID",
                                 dimension_numbers=("NCHW", "OIHW", "NCHW"))
        + params["conv1_b"][None, :, None, None])
    phi1 = jax.nn.relu(
        lax.conv_general_dilated(phi0, params["conv2_w"], (t_out, 1), "VALID",
                                 dimension_numbers=("NCHW", "OIHW", "NCHW"))
        + params["conv2_b"][None, :, None, None])
    h = jnp.concatenate([phi1, w0, act], axis=1)              # [B, H1+2, 1, A]
    hf = h.reshape(B, -1)
    return hf @ params["lin_w"].T + params["lin_b"]           # [B, 1]


def init_params(key, features, T, actions):
    """Deterministic init (torch-style uniform bounds)."""
    t_out = T - 3
    ks = jax.random.split(key, 6)

    def u(k, shape, fan_in):
        bound = 1.0 / (fan_in ** 0.5)
        return jax.random.uniform(k, shape, jnp.float32, -bound, bound)

    lin_in = (H1 + 2) * actions
    return dict(
        conv1_w=u(ks[0], (H0, features, 3, 1), features * 3),
        conv1_b=u(ks[1], (H0,), features * 3),
        conv2_w=u(ks[2], (H1, H0, t_out, 1), H0 * t_out),
        conv2_b=u(ks[3], (H1,), H0 * t_out),
        lin_w=u(ks[4], (1, lin_in), lin_in),
        lin_b=u(ks[5], (1,), lin_in),
    )


if __name__ == "__main__":
    key = jax.random.PRNGKey(0)
    B, F_, T, A = 2, 4, 8, 8            # state_dim = (4, 8, 8), action_dim = 9
    action_dim = A + 1
    k1, k2, k3 = jax.random.split(key, 3)
    x = jax.random.normal(k1, (B, F_, T, A), jnp.float32)
    action = jax.random.normal(k2, (B, action_dim), jnp.float32)
    params = init_params(k3, F_, T, A)

    ref = reference_forward(x, action, params)

    # strict f32 path (exact match with the f32 reference)
    fwd32 = jax.jit(functools.partial(critic_forward_pallas, params=params))
    out32 = jax.block_until_ready(fwd32(x, action))
    assert out32.shape == (B, 1)
    assert jnp.allclose(out32, ref, atol=1e-4, rtol=1e-3), (out32, ref)

    # bf16-fed MXU path (f32 accumulation) -- halves streaming HBM traffic
    fwd16 = jax.jit(functools.partial(critic_forward_pallas, params=params,
                                      compute_dtype=jnp.bfloat16))
    out16 = jax.block_until_ready(fwd16(x, action))
    assert out16.shape == (B, 1)
    assert jnp.allclose(out16, ref, atol=5e-2, rtol=5e-2), (out16, ref)

    print("KERNEL_OK")
</pallas_src>

<mosaic_0001>
module attributes {stable_mosaic.version = 11 : i64} {
  func.func @_critic_kernel(%arg0: i32, %arg1: memref<1x28x128xf32, #tpu.memory_space<vmem>>, %arg2: memref<1x3x128xf32, #tpu.memory_space<vmem>>, %arg3: memref<36x29xf32, #tpu.memory_space<vmem>>, %arg4: memref<20x128xf32, #tpu.memory_space<vmem>>, %arg5: memref<3x128xf32, #tpu.memory_space<vmem>>, %arg6: memref<128x16xf32, #tpu.memory_space<vmem>>, %arg7: memref<1x1x16xf32, #tpu.memory_space<vmem>>) attributes {dimension_semantics = [#tpu.dimension_semantics<parallel>], iteration_bounds = array<i64: 1>, scalar_prefetch = 0 : i64, scratch_operands = 0 : i64, tpu.core_type = #tpu.core_type<tc>, window_params = [{transform_indices = @transform_0, window_bounds = array<i64: 1, 28, 128>}, {transform_indices = @transform_1, window_bounds = array<i64: 1, 3, 128>}, {pipeline_mode = #tpu.pipeline_mode<synchronous>, transform_indices = @transform_2, window_bounds = array<i64: 36, 29>}, {pipeline_mode = #tpu.pipeline_mode<synchronous>, transform_indices = @transform_3, window_bounds = array<i64: 20, 128>}, {pipeline_mode = #tpu.pipeline_mode<synchronous>, transform_indices = @transform_4, window_bounds = array<i64: 3, 128>}, {pipeline_mode = #tpu.pipeline_mode<synchronous>, transform_indices = @transform_5, window_bounds = array<i64: 128, 16>}, {transform_indices = @transform_6, window_bounds = array<i64: 1, 1, 16>}]} {
    %c0 = arith.constant 0 : index
    %c0_0 = arith.constant 0 : index
    %c0_1 = arith.constant 0 : index
    %0 = vector.load %arg1[%c0, %c0_0, %c0_1] : memref<1x28x128xf32, #tpu.memory_space<vmem>>, vector<1x28x128xf32>
    %1 = vector.shape_cast %0 : vector<1x28x128xf32> to vector<28x128xf32>
    %c0_2 = arith.constant 0 : index
    %c0_3 = arith.constant 0 : index
    %2 = vector.load %arg3[%c0_2, %c0_3] : memref<36x29xf32, #tpu.memory_space<vmem>>, vector<10x28xf32>
    %c0_4 = arith.constant 0 : index
    %c28 = arith.constant 28 : index
    %3 = vector.load %arg3[%c0_4, %c28] : memref<36x29xf32, #tpu.memory_space<vmem>>, vector<10x1xf32>
    %c16 = arith.constant 16 : index
    %c0_5 = arith.constant 0 : index
    %4 = vector.load %arg3[%c16, %c0_5] : memref<36x29xf32, #tpu.memory_space<vmem>>, vector<20x10xf32>
    %c16_6 = arith.constant 16 : index
    %c28_7 = arith.constant 28 : index
    %5 = vector.load %arg3[%c16_6, %c28_7] : memref<36x29xf32, #tpu.memory_space<vmem>>, vector<20x1xf32>
    %cst = arith.constant dense<0.000000e+00> : vector<10x128xf32>
    %6 = tpu.matmul %2, %1, %cst {dimension_numbers = #tpu.dot_dimension_numbers<[1], [0], [0], [1], [0, 0, 1, 1], [], []>} : vector<10x28xf32>, vector<28x128xf32>, vector<10x128xf32> -> vector<10x128xf32>
    %7 = vector.broadcast %3 : vector<10x1xf32> to vector<10x128xf32>
    %8 = arith.addf %6, %7 : vector<10x128xf32>
    %cst_8 = arith.constant 0.000000e+00 : f32
    %9 = vector.broadcast %cst_8 : f32 to vector<10x128xf32>
    %10 = arith.maximumf %8, %9 : vector<10x128xf32>
    %cst_9 = arith.constant dense<0.000000e+00> : vector<20x128xf32>
    %11 = tpu.matmul %4, %10, %cst_9 {dimension_numbers = #tpu.dot_dimension_numbers<[1], [0], [0], [1], [0, 0, 1, 1], [], []>} : vector<20x10xf32>, vector<10x128xf32>, vector<20x128xf32> -> vector<20x128xf32>
    %12 = vector.broadcast %5 : vector<20x1xf32> to vector<20x128xf32>
    %13 = arith.addf %11, %12 : vector<20x128xf32>
    %cst_10 = arith.constant 0.000000e+00 : f32
    %14 = vector.broadcast %cst_10 : f32 to vector<20x128xf32>
    %15 = arith.maximumf %13, %14 : vector<20x128xf32>
    %c0_11 = arith.constant 0 : index
    %c0_12 = arith.constant 0 : index
    %16 = vector.load %arg4[%c0_11, %c0_12] : memref<20x128xf32, #tpu.memory_space<vmem>>, vector<20x128xf32>
    %17 = arith.mulf %15, %16 : vector<20x128xf32>
    %cst_13 = arith.constant dense<0.000000e+00> : vector<128xf32>
    %18 = vector.multi_reduction <add>, %17, %cst_13 [0] : vector<20x128xf32> to vector<128xf32>
    %19 = vector.shape_cast %18 : vector<128xf32> to vector<1x128xf32>
    %c0_14 = arith.constant 0 : index
    %c0_15 = arith.constant 0 : index
    %c0_16 = arith.constant 0 : index
    %20 = vector.load %arg2[%c0_14, %c0_15, %c0_16] : memref<1x3x128xf32, #tpu.memory_space<vmem>>, vector<1x3x128xf32>
    %21 = vector.shape_cast %20 : vector<1x3x128xf32> to vector<3x128xf32>
    %c0_17 = arith.constant 0 : index
    %c0_18 = arith.constant 0 : index
    %22 = vector.load %arg5[%c0_17, %c0_18] : memref<3x128xf32, #tpu.memory_space<vmem>>, vector<3x128xf32>
    %23 = arith.mulf %21, %22 : vector<3x128xf32>
    %cst_19 = arith.constant dense<0.000000e+00> : vector<128xf32>
    %24 = vector.multi_reduction <add>, %23, %cst_19 [0] : vector<3x128xf32> to vector<128xf32>
    %25 = vector.shape_cast %24 : vector<128xf32> to vector<1x128xf32>
    %26 = arith.addf %19, %25 : vector<1x128xf32>
    %c0_20 = arith.constant 0 : index
    %c0_21 = arith.constant 0 : index
    %27 = vector.load %arg6[%c0_20, %c0_21] : memref<128x16xf32, #tpu.memory_space<vmem>>, vector<128x16xf32>
    %cst_22 = arith.constant dense<0.000000e+00> : vector<1x16xf32>
    %28 = tpu.matmul %26, %27, %cst_22 {dimension_numbers = #tpu.dot_dimension_numbers<[1], [0], [0], [1], [0, 0, 1, 1], [], []>} : vector<1x128xf32>, vector<128x16xf32>, vector<1x16xf32> -> vector<1x16xf32>
    %c0_23 = arith.constant 0 : index
    %c0_24 = arith.constant 0 : index
    %c0_25 = arith.constant 0 : index
    %29 = vector.load %arg7[%c0_23, %c0_24, %c0_25] : memref<1x1x16xf32, #tpu.memory_space<vmem>>, vector<1x1x16xf32>
    %30 = vector.shape_cast %29 : vector<1x1x16xf32> to vector<1x16xf32>
    %31 = vector.shape_cast %28 : vector<1x16xf32> to vector<1x1x16xf32>
    tpu.vector_store %arg7[%c0_23, %c0_24, %c0_25], %31 {strides = array<i32>} : memref<1x1x16xf32, #tpu.memory_space<vmem>>, vector<1x1x16xf32>,
    return
  }
  func.func @transform_0(%arg0: i32) -> (i32, i32, i32) {
    %c0_i32 = arith.constant 0 : i32
    %c0_i32_0 = arith.constant 0 : i32
    %c0_i32_1 = arith.constant 0 : i32
    return %arg0, %c0_i32, %c0_i32_0 : i32, i32, i32
  }
  func.func @transform_1(%arg0: i32) -> (i32, i32, i32) {
    %c0_i32 = arith.constant 0 : i32
    %c0_i32_0 = arith.constant 0 : i32
    %c0_i32_1 = arith.constant 0 : i32
    return %arg0, %c0_i32, %c0_i32_0 : i32, i32, i32
  }
  func.func @transform_2(%arg0: i32) -> (i32, i32) {
    %c0_i32 = arith.constant 0 : i32
    %c0_i32_0 = arith.constant 0 : i32
    %c0_i32_1 = arith.constant 0 : i32
    return %c0_i32, %c0_i32_0 : i32, i32
  }
  func.func @transform_3(%arg0: i32) -> (i32, i32) {
    %c0_i32 = arith.constant 0 : i32
    %c0_i32_0 = arith.constant 0 : i32
    %c0_i32_1 = arith.constant 0 : i32
    return %c0_i32, %c0_i32_0 : i32, i32
  }
  func.func @transform_4(%arg0: i32) -> (i32, i32) {
    %c0_i32 = arith.constant 0 : i32
    %c0_i32_0 = arith.constant 0 : i32
    %c0_i32_1 = arith.constant 0 : i32
    return %c0_i32, %c0_i32_0 : i32, i32
  }
  func.func @transform_5(%arg0: i32) -> (i32, i32) {
    %c0_i32 = arith.constant 0 : i32
    %c0_i32_0 = arith.constant 0 : i32
    %c0_i32_1 = arith.constant 0 : i32
    return %c0_i32, %c0_i32_0 : i32, i32
  }
  func.func @transform_6(%arg0: i32) -> (i32, i32, i32) {
    %c0_i32 = arith.constant 0 : i32
    %c0_i32_0 = arith.constant 0 : i32
    %c0_i32_1 = arith.constant 0 : i32
    return %arg0, %c0_i32, %c0_i32_0 : i32, i32, i32
  }
}

</mosaic_0001>

<llo_original>
// kernel: tile.18
$region0: #{tile.18}
  #allocation0 [shape = 's32[1]{0}', space=sflag, size = 0x4, scoped, tag = 'scoped memory for tile.18']
  %s0 = inlined_call_operand.vmem [shape: f32[2], index: 0, kind: input, shape index: {}]
  %s1 = inlined_call_operand.vmem [shape: f32[5,2], index: 1, kind: output, shape index: {}]
  // Predicated region
  $region2: #{tile.18} parent=0 // pred_check
    _
  $region3: #{tile.18} parent=0 // pred_check_branch
    %3 = sbr.rel (0) target = $region5
  $region4: #{tile.18} parent=0 // pred_region
    _
  $region5: #{tile.18} parent=0 // pred_fallthru
    _
  %v4 = vld [vmem:[%s0] ss:$0 sm:$0xff]
  %5 = vst [vmem:[%s1] sm:$0xff] %v4

// kernel: critic_forward_pallas.1
$region0: #{critic_forward_pallas.1}
  #allocation0 [shape = 'u32[]', space=smem, size = 0x4, offset = 0x4, fixed_abs, tag = 'smem constant byte address 0x4 - core index']
  #allocation1 [shape = 'u32[144,128]{1,0:T(1,128)}', space=vmem, size = 0x12000, scoped, tag = 'internal scratch']
  %s0 = inlined_call_operand.vmem [shape: f32[1,28,128], index: 0, kind: input, shape index: {}]
  %s1 = inlined_call_operand.vmem [shape: f32[1,3,128], index: 1, kind: input, shape index: {}]
  %s2 = inlined_call_operand.vmem [shape: f32[36,29], index: 2, kind: input, shape index: {}]
  %s3 = inlined_call_operand.vmem [shape: f32[20,128], index: 3, kind: input, shape index: {}]
  %s4 = inlined_call_operand.vmem [shape: f32[3,128], index: 4, kind: input, shape index: {}]
  %s5 = inlined_call_operand.vmem [shape: f32[128,16], index: 5, kind: input, shape index: {}]
  %s6 = inlined_call_operand.vmem [shape: f32[1,1,16], index: 6, kind: output, shape index: {}]
  %s7 = sld [smem:[#allocation0]]
  $region34: #{critic_forward_pallas.1} parent=0
    _
  %s9 = ssub.s32 1, %s7
  %s10 = scalar_select 0, %s9, %s7
  // Predicated region
  $region2: #{critic_forward_pallas.1} parent=0 // pred_check
    _
  $region3: #{critic_forward_pallas.1} parent=0 // pred_check_branch
    %12 = sbr.rel (0) target = $region5
  $region4: #{critic_forward_pallas.1} parent=0 // pred_region
    _
  $region5: #{critic_forward_pallas.1} parent=0 // pred_fallthru
    _
  // Predicated region
  $region6: #{critic_forward_pallas.1} parent=0 // pred_check
    _
  $region7: #{critic_forward_pallas.1} parent=0 // pred_check_branch
    %14 = sbr.rel (0) target = $region9
  $region8: #{critic_forward_pallas.1} parent=0 // pred_region
    _
  $region9: #{critic_forward_pallas.1} parent=0 // pred_fallthru
    _
  // Predicated region
  $region10: #{critic_forward_pallas.1} parent=0 // pred_check
    _
  $region11: #{critic_forward_pallas.1} parent=0 // pred_check_branch
    %16 = sbr.rel (0) target = $region13
  $region12: #{critic_forward_pallas.1} parent=0 // pred_region
    _
  $region13: #{critic_forward_pallas.1} parent=0 // pred_fallthru
    _
  // Predicated region
  $region14: #{critic_forward_pallas.1} parent=0 // pred_check
    _
  $region15: #{critic_forward_pallas.1} parent=0 // pred_check_branch
    %18 = sbr.rel (0) target = $region17
  $region16: #{critic_forward_pallas.1} parent=0 // pred_region
    _
  $region17: #{critic_forward_pallas.1} parent=0 // pred_fallthru
    _
  // Predicated region
  $region18: #{critic_forward_pallas.1} parent=0 // pred_check
    _
  $region19: #{critic_forward_pallas.1} parent=0 // pred_check_branch
    %20 = sbr.rel (0) target = $region21
  $region20: #{critic_forward_pallas.1} parent=0 // pred_region
    _
  $region21: #{critic_forward_pallas.1} parent=0 // pred_fallthru
    _
  // Predicated region
  $region22: #{critic_forward_pallas.1} parent=0 // pred_check
    _
  $region23: #{critic_forward_pallas.1} parent=0 // pred_check_branch
    %22 = sbr.rel (0) target = $region25
  $region24: #{critic_forward_pallas.1} parent=0 // pred_region
    _
  $region25: #{critic_forward_pallas.1} parent=0 // pred_fallthru
    _
  %v23 = vld [vmem:[%s0] sm:$0xff]
  %v24 = vld [vmem:[%s0 + $0x8] sm:$0xff]
  %v25 = vld [vmem:[%s0 + $0x10] sm:$0xff]
  %v26 = vld [vmem:[%s0 + $0x18] sm:$0xf]
  %v27 = vld [vmem:[%s2] sm:$0xff]
  %v28 = vld [vmem:[%s2 + $0x8] sm:$0x3]
  %v29 = vld [vmem:[%s2 + $0x10] sm:$0xff]
  %v30 = vld [vmem:[%s2 + $0x18] sm:$0xff]
  %v31 = vld [vmem:[%s2 + $0x20] sm:$0xf]
  %33 = vset.pattern.permute.xlu0 28
  %34 = vperm.xlu0 %33, %v27
  %v35 = vpop.permute.xlu0 %34
  %38 = vset.pattern.permute.xlu0 28
  %39 = vperm.xlu0 %38, %v28
  %v40 = vpop.permute.xlu0 %39
  %vm42 = vcmask 228352
  %v43 = vsel %vm42, %v27, 0
  %v45 = vsel %vm42, %v28, 0
  %vm47 = vcmask 1043456
  %v49 = vsel %vm47, %v26, 0
  %51 = vmatprep.subr.mxu0 0.0
  %52 = vmatpush1.msra.mxu0 %v23
  %53 = vmatprep.subr.mxu0 0.0
  %54 = vmatpush1.msra.mxu0 %v24
  %55 = vmatprep.subr.mxu0 0.0
  %56 = vmatpush1.msra.mxu0 %v25
  %57 = vmatprep.subr.mxu0 0.0
  %58 = vmatpush1.msra.mxu0 %v49
  %59 = vmatprep.subr.mxu0 0.0
  %60 = vmatpush1.msra.mxu0 0.0
  %61 = vmatprep.subr.mxu0 0.0
  %62 = vmatpush1.msra.mxu0 0.0
  %63 = vmatprep.subr.mxu0 0.0
  %64 = vmatpush1.msra.mxu0 0.0
  %65 = vmatprep.subr.mxu0 0.0
  %66 = vmatpush1.msra.mxu0 0.0
  %67 = vmatprep.subr.mxu0 0.0
  %68 = vmatpush1.msra.mxu0 0.0
  %69 = vmatprep.subr.mxu0 0.0
  %70 = vmatpush1.msra.mxu0 0.0
  %71 = vmatprep.subr.mxu0 0.0
  %72 = vmatpush1.msra.mxu0 0.0
  %73 = vmatprep.subr.mxu0 0.0
  %74 = vmatpush1.msra.mxu0 0.0
  %75 = vmatprep.subr.mxu0 0.0
  %76 = vmatpush1.msra.mxu0 0.0
  %77 = vmatprep.subr.mxu0 0.0
  %78 = vmatpush1.msra.mxu0 0.0
  %79 = vmatprep.subr.mxu0 0.0
  %80 = vmatpush1.msra.mxu0 0.0
  %81 = vmatprep.subr.mxu0 0.0
  %82 = vmatpush1.msra.mxu0 0.0
  %83 = vmatprep.subr.mxu0 0.0
  %84 = vmatpush1.msra.mxu0 0.0
  %85 = vmatprep.subr.mxu0 0.0
  %86 = vmatpush1.msra.mxu0 0.0
  %87 = vmatprep.subr.mxu0 0.0
  %88 = vmatpush1.msra.mxu0 0.0
  %89 = vmatprep.subr.mxu0 0.0
  %90 = vmatpush1.msra.mxu0 0.0
  %91 = vmatprep.subr.mxu0 0.0
  %92 = vmatpush1.msra.mxu0 0.0
  %93 = vmatprep.subr.mxu0 0.0
  %94 = vmatpush1.msra.mxu0 0.0
  %95 = vmatprep.subr.mxu0 0.0
  %96 = vmatpush1.msra.mxu0 0.0
  %97 = vmatprep.subr.mxu0 0.0
  %98 = vmatpush1.msra.mxu0 0.0
  %99 = vmatprep.subr.mxu0 0.0
  %100 = vmatpush1.msra.mxu0 0.0
  %101 = vmatprep.subr.mxu0 0.0
  %102 = vmatpush1.msra.mxu0 0.0
  %103 = vmatprep.subr.mxu0 0.0
  %104 = vmatpush1.msra.mxu0 0.0
  %105 = vmatprep.subr.mxu0 0.0
  %106 = vmatpush1.msra.mxu0 0.0
  %107 = vmatprep.subr.mxu0 0.0
  %108 = vmatpush1.msra.mxu0 0.0
  %109 = vmatprep.subr.mxu0 0.0
  %110 = vmatpush1.msra.mxu0 0.0
  %111 = vmatprep.subr.mxu0 0.0
  %112 = vmatpush1.msra.mxu0 0.0
  %113 = vmatprep.subr.mxu0 0.0
  %114 = vmatpush1.msra.mxu0 0.0
  %115 = vmatprep.mubr.f32.mxu0 0.0
  %116 = vmatmul.mubr.f32.gmra.mrb[0].mxu0 %v43
  %v117 = vpop.f32.mrb[0].mxu0
  %v118 = vadd.f32 %v35, %v117
  %v119 = vpop.f32.mrb[0].mxu0
  %120 = vmatprep.mubr.f32.mxu0 0.0
  %121 = vmatmul.mubr.f32.gmra.mrb[0].mxu0 %v45
  %v122 = vpop.f32.mrb[0].mxu0
  %v123 = vadd.f32 %v40, %v122
  %v124 = vpop.f32.mrb[0].mxu0
  %125 = vdwg.mxu0
  %v126 = vmax.f32 %v118, 0.0
  %v127 = vmax.f32 %v123, 0.0
  %129 = vset.pattern.permute.xlu0 28
  %130 = vperm.xlu0 %129, %v29
  %v131 = vpop.permute.xlu0 %130
  %134 = vset.pattern.permute.xlu0 28
  %135 = vperm.xlu0 %134, %v30
  %v136 = vpop.permute.xlu0 %135
  %139 = vset.pattern.permute.xlu0 28
  %140 = vperm.xlu0 %139, %v31
  %v141 = vpop.permute.xlu0 %140
  %vm143 = vcmask 80896
  %v144 = vsel %vm143, %v29, 0
  %v146 = vsel %vm143, %v30, 0
  %v148 = vsel %vm143, %v31, 0
  %vm150 = vcmask 1041408
  %v152 = vsel %vm150, %v127, 0
  %154 = vmatprep.subr.mxu0 0.0
  %155 = vmatpush1.msra.mxu0 %v126
  %156 = vmatprep.subr.mxu0 0.0
  %157 = vmatpush1.msra.mxu0 %v152
  %158 = vmatprep.subr.mxu0 0.0
  %159 = vmatpush1.msra.mxu0 0.0
  %160 = vmatprep.subr.mxu0 0.0
  %161 = vmatpush1.msra.mxu0 0.0
  %162 = vmatprep.subr.mxu0 0.0
  %163 = vmatpush1.msra.mxu0 0.0
  %164 = vmatprep.subr.mxu0 0.0
  %165 = vmatpush1.msra.mxu0 0.0
  %166 = vmatprep.subr.mxu0 0.0
  %167 = vmatpush1.msra.mxu0 0.0
  %168 = vmatprep.subr.mxu0 0.0
  %169 = vmatpush1.msra.mxu0 0.0
  %170 = vmatprep.subr.mxu0 0.0
  %171 = vmatpush1.msra.mxu0 0.0
  %172 = vmatprep.subr.mxu0 0.0
  %173 = vmatpush1.msra.mxu0 0.0
  %174 = vmatprep.subr.mxu0 0.0
  %175 = vmatpush1.msra.mxu0 0.0
  %176 = vmatprep.subr.mxu0 0.0
  %177 = vmatpush1.msra.mxu0 0.0
  %178 = vmatprep.subr.mxu0 0.0
  %179 = vmatpush1.msra.mxu0 0.0
  %180 = vmatprep.subr.mxu0 0.0
  %181 = vmatpush1.msra.mxu0 0.0
  %182 = vmatprep.subr.mxu0 0.0
  %183 = vmatpush1.msra.mxu0 0.0
  %184 = vmatprep.subr.mxu0 0.0
  %185 = vmatpush1.msra.mxu0 0.0
  %186 = vmatprep.subr.mxu0 0.0
  %187 = vmatpush1.msra.mxu0 0.0
  %188 = vmatprep.subr.mxu0 0.0
  %189 = vmatpush1.msra.mxu0 0.0
  %190 = vmatprep.subr.mxu0 0.0
  %191 = vmatpush1.msra.mxu0 0.0
  %192 = vmatprep.subr.mxu0 0.0
  %193 = vmatpush1.msra.mxu0 0.0
  %194 = vmatprep.subr.mxu0 0.0
  %195 = vmatpush1.msra.mxu0 0.0
  %196 = vmatprep.subr.mxu0 0.0
  %197 = vmatpush1.msra.mxu0 0.0
  %198 = vmatprep.subr.mxu0 0.0
  %199 = vmatpush1.msra.mxu0 0.0
  %200 = vmatprep.subr.mxu0 0.0
  %201 = vmatpush1.msra.mxu0 0.0
  %202 = vmatprep.subr.mxu0 0.0
  %203 = vmatpush1.msra.mxu0 0.0
  %204 = vmatprep.subr.mxu0 0.0
  %205 = vmatpush1.msra.mxu0 0.0
  %206 = vmatprep.subr.mxu0 0.0
  %207 = vmatpush1.msra.mxu0 0.0
  %208 = vmatprep.subr.mxu0 0.0
  %209 = vmatpush1.msra.mxu0 0.0
  %210 = vmatprep.subr.mxu0 0.0
  %211 = vmatpush1.msra.mxu0 0.0
  %212 = vmatprep.subr.mxu0 0.0
  %213 = vmatpush1.msra.mxu0 0.0
  %214 = vmatprep.subr.mxu0 0.0
  %215 = vmatpush1.msra.mxu0 0.0
  %216 = vmatprep.subr.mxu0 0.0
  %217 = vmatpush1.msra.mxu0 0.0
  %218 = vmatprep.mubr.f32.mxu0 0.0
  %219 = vmatmul.mubr.f32.gmra.mrb[0].mxu0 %v144
  %v220 = vpop.f32.mrb[0].mxu0
  %v221 = vadd.f32 %v131, %v220
  %v222 = vpop.f32.mrb[0].mxu0
  %223 = vmatprep.mubr.f32.mxu0 0.0
  %224 = vmatmul.mubr.f32.gmra.mrb[0].mxu0 %v146
  %v225 = vpop.f32.mrb[0].mxu0
  %v226 = vadd.f32 %v136, %v225
  %v227 = vpop.f32.mrb[0].mxu0
  %228 = vmatprep.mubr.f32.mxu0 0.0
  %229 = vmatmul.mubr.f32.gmra.mrb[0].mxu0 %v148
  %v230 = vpop.f32.mrb[0].mxu0
  %v231 = vadd.f32 %v141, %v230
  %v232 = vpop.f32.mrb[0].mxu0
  %233 = vdwg.mxu0
  %v234 = vmax.f32 %v221, 0.0
  %v235 = vmax.f32 %v226, 0.0
  %v236 = vmax.f32 %v231, 0.0
  %v237 = vld [vmem:[%s3] sm:$0xff]
  %v238 = vld [vmem:[%s3 + $0x8] sm:$0xff]
  %v239 = vld [vmem:[%s3 + $0x10] sm:$0xf]
  %v240 = vmul.f32 %v234, %v237
  %v241 = vmul.f32 %v235, %v238
  %v242 = vmul.f32 %v236, %v239
  %v243 = vadd.f32 %v240, %v241
  %v244 = vsel %vm47, %v242, 0.0
  %v245 = vadd.f32 %v243, %v244
  %v246 = vrot.slane %v245, 4
  %v247 = vadd.f32 %v245, %v246
  %v248 = vrot.slane %v247, 2
  %v249 = vadd.f32 %v247, %v248
  %v250 = vrot.slane %v249, 1
  %v251 = vadd.f32 %v249, %v250
  %v252 = vld [vmem:[%s1] sm:$0x7]
  %v253 = vld [vmem:[%s4] sm:$0x7]
  %v254 = vmul.f32 %v252, %v253
  %vm255 = vcmask 1042432
  %v256 = vsel %vm255, %v254, 0.0
  %v257 = vrot.slane %v256, 4
  %v258 = vadd.f32 %v256, %v257
  %v259 = vrot.slane %v258, 2
  %v260 = vadd.f32 %v258, %v259
  %v261 = vrot.slane %v260, 1
  %v262 = vadd.f32 %v260, %v261
  %v263 = vadd.f32 %v251, %v262
  %v264 = vld [vmem:[%s5] sm:$0xff]
  %v265 = vld [vmem:[%s5 + $0x8] sm:$0xff]
  %v266 = vld [vmem:[%s5 + $0x10] sm:$0xff]
  %v267 = vld [vmem:[%s5 + $0x18] sm:$0xff]
  %v268 = vld [vmem:[%s5 + $0x20] sm:$0xff]
  %v269 = vld [vmem:[%s5 + $0x28] sm:$0xff]
  %v270 = vld [vmem:[%s5 + $0x30] sm:$0xff]
  %v271 = vld [vmem:[%s5 + $0x38] sm:$0xff]
  %v272 = vld [vmem:[%s5 + $0x40] sm:$0xff]
  %v273 = vld [vmem:[%s5 + $0x48] sm:$0xff]
  %v274 = vld [vmem:[%s5 + $0x50] sm:$0xff]
  %v275 = vld [vmem:[%s5 + $0x58] sm:$0xff]
  %v276 = vld [vmem:[%s5 + $0x60] sm:$0xff]
  %v277 = vld [vmem:[%s5 + $0x68] sm:$0xff]
  %v278 = vld [vmem:[%s5 + $0x70] sm:$0xff]
  %v279 = vld [vmem:[%s5 + $0x78] sm:$0xff]
  %280 = vmatprep.subr.mxu0 0.0
  %281 = vmatpush1.msra.mxu0 %v264
  %282 = vmatprep.subr.mxu0 0.0
  %283 = vmatpush1.msra.mxu0 %v265
  %284 = vmatprep.subr.mxu0 0.0
  %285 = vmatpush1.msra.mxu0 %v266
  %286 = vmatprep.subr.mxu0 0.0
  %287 = vmatpush1.msra.mxu0 %v267
  %288 = vmatprep.subr.mxu0 0.0
  %289 = vmatpush1.msra.mxu0 %v268
  %290 = vmatprep.subr.mxu0 0.0
  %291 = vmatpush1.msra.mxu0 %v269
  %292 = vmatprep.subr.mxu0 0.0
  %293 = vmatpush1.msra.mxu0 %v270
  %294 = vmatprep.subr.mxu0 0.0
  %295 = vmatpush1.msra.mxu0 %v271
  %296 = vmatprep.subr.mxu0 0.0
  %297 = vmatpush1.msra.mxu0 %v272
  %298 = vmatprep.subr.mxu0 0.0
  %299 = vmatpush1.msra.mxu0 %v273
  %300 = vmatprep.subr.mxu0 0.0
  %301 = vmatpush1.msra.mxu0 %v274
  %302 = vmatprep.subr.mxu0 0.0
  %303 = vmatpush1.msra.mxu0 %v275
  %304 = vmatprep.subr.mxu0 0.0
  %305 = vmatpush1.msra.mxu0 %v276
  %306 = vmatprep.subr.mxu0 0.0
  %307 = vmatpush1.msra.mxu0 %v277
  %308 = vmatprep.subr.mxu0 0.0
  %309 = vmatpush1.msra.mxu0 %v278
  %310 = vmatprep.subr.mxu0 0.0
  %311 = vmatpush1.msra.mxu0 %v279
  %312 = vmatprep.subr.mxu0 0.0
  %313 = vmatpush1.msra.mxu0 0.0
  %314 = vmatprep.subr.mxu0 0.0
  %315 = vmatpush1.msra.mxu0 0.0
  %316 = vmatprep.subr.mxu0 0.0
  %317 = vmatpush1.msra.mxu0 0.0
  %318 = vmatprep.subr.mxu0 0.0
  %319 = vmatpush1.msra.mxu0 0.0
  %320 = vmatprep.subr.mxu0 0.0
  %321 = vmatpush1.msra.mxu0 0.0
  %322 = vmatprep.subr.mxu0 0.0
  %323 = vmatpush1.msra.mxu0 0.0
  %324 = vmatprep.subr.mxu0 0.0
  %325 = vmatpush1.msra.mxu0 0.0
  %326 = vmatprep.subr.mxu0 0.0
  %327 = vmatpush1.msra.mxu0 0.0
  %328 = vmatprep.subr.mxu0 0.0
  %329 = vmatpush1.msra.mxu0 0.0
  %330 = vmatprep.subr.mxu0 0.0
  %331 = vmatpush1.msra.mxu0 0.0
  %332 = vmatprep.subr.mxu0 0.0
  %333 = vmatpush1.msra.mxu0 0.0
  %334 = vmatprep.subr.mxu0 0.0
  %335 = vmatpush1.msra.mxu0 0.0
  %336 = vmatprep.subr.mxu0 0.0
  %337 = vmatpush1.msra.mxu0 0.0
  %338 = vmatprep.subr.mxu0 0.0
  %339 = vmatpush1.msra.mxu0 0.0
  %340 = vmatprep.subr.mxu0 0.0
  %341 = vmatpush1.msra.mxu0 0.0
  %342 = vmatprep.subr.mxu0 0.0
  %343 = vmatpush1.msra.mxu0 0.0
  %344 = vmatprep.mubr.f32.mxu0 0.0
  %345 = vmatmul.mubr.f32.gmra.mrb[0].mxu0 %v263
  %v346 = vpop.f32.mrb[0].mxu0
  %v347 = vadd.f32 0.0, %v346
  %v348 = vpop.f32.mrb[0].mxu0
  %349 = vdwg.mxu0
  %vm350 = vcmask 122880
  %351 = vst.msk [vmem:[%s6] sm:$0x1] %vm350, %v347
  // Predicated region
  $region26: #{critic_forward_pallas.1} parent=0 // pred_check
    _
  $region27: #{critic_forward_pallas.1} parent=0 // pred_check_branch
    %353 = sbr.rel (0) target = $region29
  $region28: #{critic_forward_pallas.1} parent=0 // pred_region
    _
  $region29: #{critic_forward_pallas.1} parent=0 // pred_fallthru
    _
  // Predicated region
  $region30: #{critic_forward_pallas.1} parent=0 // pred_check
    _
  $region31: #{critic_forward_pallas.1} parent=0 // pred_check_branch
    %355 = sbr.rel (0) target = $region33
  $region32: #{critic_forward_pallas.1} parent=0 // pred_region
    _
  $region33: #{critic_forward_pallas.1} parent=0 // pred_fallthru
    _

</llo_original>
